<compile_context>
chip_gen: v7x
topology: tpu7x:2x2x1
jax: 0.10.0
libtpu: 0.0.40
codegen_flags: <defaults>
</compile_context>

<pallas_src>
import jax
import jax.numpy as jnp
from jax.experimental import pallas as pl
from jax.experimental.pallas import tpu as pltpu

_LANE = 128
_SUBLANE = 8
_TARGET_BLOCK_BYTES = 2 * 1024 * 1024   # ~roofline sweet spot, amortizes step cost
_MAX_BLOCK_BYTES = 4 * 1024 * 1024      # keeps 4-buffer footprint <= 16 MiB


def _scale_flux_kernel(y_ref, inv_ref, o_ref):
    # y_ref / o_ref: (TB, TF) flux tile.  inv_ref: (TB, 1) per-row ref^2/d^2.
    o_ref[...] = (y_ref[...] * inv_ref[...]).astype(o_ref.dtype)


def _round_down(x: int, m: int) -> int:
    return max(m, (x // m) * m)


def _choose_tiles(B: int, F: int, itemsize: int):
    """Pick a lane-dense (TB, TF) block of ~2 MiB (cap 4 MiB)."""
    target_elems = max(1, _TARGET_BLOCK_BYTES // itemsize)
    max_elems = max(1, _MAX_BLOCK_BYTES // itemsize)
    f_padded = pl.cdiv(F, _LANE) * _LANE

    # TB must be a multiple of 8 (sublane) or equal to B.
    tb_min = B if B <= _SUBLANE else _SUBLANE

    # Feature tile: cover as much of the feature axis as fits the max block
    # with tb_min rows; always a multiple of 128 (lane-dense, unmasked vst
    # except for the ragged final feature block).
    tf_cap = _round_down(max(max_elems // tb_min, _LANE), _LANE)
    TF = min(f_padded, tf_cap)

    # Batch tile: fill the target block with whole rows.
    rows = max(tb_min, target_elems // TF)
    if rows >= B:
        TB = B
    else:
        TB = _round_down(rows, _SUBLANE)

    # v7x has 2 TensorCores; avoid collapsing a large input into a single
    # grid step (one TC would sit idle).  Harmless no-op on v5e/v6e.
    if TB >= B and TF >= f_padded and TF >= 2 * _LANE \
            and TB * TF * itemsize >= (1 << 20):
        TF = pl.cdiv(pl.cdiv(TF, 2), _LANE) * _LANE

    return TB, TF


def scale_flux(y: jax.Array, distance: jax.Array,
               reference_distance: float = 1.0) -> jax.Array:
    """JAX/Pallas equivalent of ScaleFluxModule.forward."""
    if distance.ndim != 2 or distance.shape[1] != 1:
        raise ValueError("distance must have shape (batch, 1)")
    if y.ndim not in (2, 4):
        raise ValueError("y must have 2 or 4 dimensions")
    if y.shape[0] != distance.shape[0]:
        raise ValueError("Batch dimension of y and distance must match.")

    orig_shape = y.shape
    B = y.shape[0]
    F = 1
    for s in y.shape[1:]:
        F *= s
    y2d = y.reshape(B, F)  # free: row-major with leading batch axis

    # Per-row scale ref^2 / d^2, computed once in f32 (B flops, negligible).
    # Note: single association y * (ref^2/d^2); within fp32 tolerance of the
    # torch expression (y * ref^2) / d^2.  reference_distance is static.
    d = distance.astype(jnp.float32)
    inv = (float(reference_distance) ** 2) / (d * d)  # (B, 1) f32

    itemsize = jnp.dtype(y.dtype).itemsize
    TB, TF = _choose_tiles(B, F, itemsize)
    grid = (pl.cdiv(B, TB), pl.cdiv(F, TF))

    out2d = pl.pallas_call(
        _scale_flux_kernel,
        out_shape=jax.ShapeDtypeStruct((B, F), y.dtype),
        grid=grid,
        in_specs=[
            pl.BlockSpec((TB, TF), lambda i, j: (i, j)),   # flux tile
            pl.BlockSpec((TB, 1), lambda i, j: (i, 0)),    # per-row scale
        ],
        out_specs=pl.BlockSpec((TB, TF), lambda i, j: (i, j)),
        compiler_params=pltpu.CompilerParams(
            # Both grid axes write independent output tiles (megacore-shardable).
            dimension_semantics=("parallel", "parallel"),
            # 2-in + 2-out buffers of <=4 MiB fit comfortably; the explicit
            # limit is what lets >1 MiB double-buffered blocks compile on v5e
            # (16 MiB default scoped VMEM) and stays within v7x's 64 MiB.
            vmem_limit_bytes=32 * 1024 * 1024,
        ),
        cost_estimate=pl.CostEstimate(
            flops=B * F,
            transcendentals=0,
            bytes_accessed=2 * B * F * itemsize + B * 4,
        ),
    )(y2d, inv)

    return out2d.reshape(orig_shape)


if __name__ == "__main__":
    key = jax.random.PRNGKey(0)
    k1, k2, k3, k4 = jax.random.split(key, 4)

    reference_distance = 2.0

    B = 2
    dist = jax.random.uniform(k2, (B, 1), dtype=jnp.float32) + 0.5

    # Case 1: 2D flux tensor (batch, n_wavelengths)
    NW = 256
    y2 = jax.random.uniform(k1, (B, NW), dtype=jnp.float32) + 0.1
    out2 = jax.block_until_ready(scale_flux(y2, dist, reference_distance))
    ref2 = y2 * reference_distance ** 2 / dist ** 2
    assert jnp.allclose(out2, ref2, rtol=1e-5, atol=1e-6), "2D mismatch"

    # Case 2: 4D flux tensor (batch, n_wavelengths, H, W)  (NCHW)
    C, H, W = 4, 16, 16
    y4 = jax.random.uniform(k3, (B, C, H, W), dtype=jnp.float32) + 0.1
    out4 = jax.block_until_ready(scale_flux(y4, dist, reference_distance))
    ref4 = y4 * reference_distance ** 2 / dist[:, :, None, None] ** 2
    assert jnp.allclose(out4, ref4, rtol=1e-5, atol=1e-6), "4D mismatch"

    # Case 3: non-128-aligned feature count (ragged/masked final block,
    # no wrapper pad or output slice)
    NW3 = 200
    y3 = jax.random.uniform(k4, (B, NW3), dtype=jnp.float32) + 0.1
    out3 = jax.block_until_ready(scale_flux(y3, dist, reference_distance))
    ref3 = y3 * reference_distance ** 2 / dist ** 2
    assert jnp.allclose(out3, ref3, rtol=1e-5, atol=1e-6), "unaligned mismatch"

    print("KERNEL_OK")
</pallas_src>

<mosaic_0001>
module attributes {stable_mosaic.version = 11 : i64} {
  func.func @_scale_flux_kernel(%arg0: i32, %arg1: i32, %arg2: memref<2x256xf32, #tpu.memory_space<vmem>>, %arg3: memref<2x1xf32, #tpu.memory_space<vmem>>, %arg4: memref<2x256xf32, #tpu.memory_space<vmem>>) attributes {dimension_semantics = [#tpu.dimension_semantics<parallel>, #tpu.dimension_semantics<parallel>], iteration_bounds = array<i64: 1, 1>, scalar_prefetch = 0 : i64, scratch_operands = 0 : i64, tpu.core_type = #tpu.core_type<tc>, window_params = [{transform_indices = @transform_0, window_bounds = array<i64: 2, 256>}, {transform_indices = @transform_1, window_bounds = array<i64: 2, 1>}, {transform_indices = @transform_2, window_bounds = array<i64: 2, 256>}]} {
    %c0 = arith.constant 0 : index
    %c0_0 = arith.constant 0 : index
    %0 = vector.load %arg2[%c0, %c0_0] : memref<2x256xf32, #tpu.memory_space<vmem>>, vector<2x256xf32>
    %c0_1 = arith.constant 0 : index
    %c0_2 = arith.constant 0 : index
    %1 = vector.load %arg3[%c0_1, %c0_2] : memref<2x1xf32, #tpu.memory_space<vmem>>, vector<2x1xf32>
    %2 = vector.broadcast %1 : vector<2x1xf32> to vector<2x256xf32>
    %3 = arith.mulf %0, %2 : vector<2x256xf32>
    %c0_3 = arith.constant 0 : index
    %c0_4 = arith.constant 0 : index
    %4 = vector.load %arg4[%c0_3, %c0_4] : memref<2x256xf32, #tpu.memory_space<vmem>>, vector<2x256xf32>
    tpu.vector_store %arg4[%c0_3, %c0_4], %3 {strides = array<i32>} : memref<2x256xf32, #tpu.memory_space<vmem>>, vector<2x256xf32>,
    return
  }
  func.func @transform_0(%arg0: i32, %arg1: i32) -> (i32, i32) {
    %c0_i32 = arith.constant 0 : i32
    return %arg0, %arg1 : i32, i32
  }
  func.func @transform_1(%arg0: i32, %arg1: i32) -> (i32, i32) {
    %c0_i32 = arith.constant 0 : i32
    %c0_i32_0 = arith.constant 0 : i32
    return %arg0, %c0_i32 : i32, i32
  }
  func.func @transform_2(%arg0: i32, %arg1: i32) -> (i32, i32) {
    %c0_i32 = arith.constant 0 : i32
    return %arg0, %arg1 : i32, i32
  }
}

</mosaic_0001>

<llo_original>
// kernel: tpu_custom_call.1
$region0: #{tpu_custom_call.1}
  #allocation0 [shape = 'u32[]', space=smem, size = 0x4, offset = 0x4, fixed_abs, tag = 'smem constant byte address 0x4 - core index']
  #allocation1 [shape = 'u32[144,128]{1,0:T(1,128)}', space=vmem, size = 0x12000, scoped, tag = 'internal scratch']
  %s0 = inlined_call_operand.hbm [shape: f32[2,256], index: 0, kind: input, shape index: {}]
  %s1 = inlined_call_operand.vmem [shape: f32[2,1], index: 1, kind: input, shape index: {}]
  %s2 = inlined_call_operand.hbm [shape: f32[2,256], index: 2, kind: output, shape index: {}]
  %s3 = sld [smem:[#allocation0]]
  $region22: #{tpu_custom_call.1} parent=0
    _
  %s5 = ssub.s32 1, %s3
  %s6 = scalar_select 0, %s5, %s3
  $region1: #{tpu_custom_call.1} parent=0
    #allocation2 [shape = 'u8[2048]{0}', space=vmem, size = 0x800, scoped, tag = 'input window, operand 0, single buffered']
    #allocation3 [shape = 's32[1]{0}', space=sflag, size = 0x4, scoped, tag = 'scoped memory for tpu_custom_call.1']
    #allocation4 [shape = 's32[1]{0}', space=sflag, size = 0x4, scoped, tag = 'scoped memory for tpu_custom_call.1']
    #allocation5 [shape = 'u8[2048]{0}', space=vmem, size = 0x800, scoped, tag = 'output window, operand 0, single buffered']
    %7 = vsyncpa [#allocation3], 0
    %8 = vsyncpa [#allocation4], 0
    // Predicated region
    $region2: #{tpu_custom_call.1} parent=1 // pred_check
      _
    $region3: #{tpu_custom_call.1} parent=1 // pred_check_branch
      %10 = sbr.rel (0) target = $region5
    $region4: #{tpu_custom_call.1} parent=1 // pred_region
      %s12 = ssub.s32 64, 64
      %13 = vsyncadd [#allocation3], %s12
      %s15 = sshll.u32 [#allocation2], 4
      %s16 = int_to_ptr.vmem [resolvable:$true] %s15
      %18 = dma.hbm_to_vmem [thread:$0]  %s0, 64, %s16, [#allocation3]
    $region5: #{tpu_custom_call.1} parent=1 // pred_fallthru
      _
    // Predicated region
    $region6: #{tpu_custom_call.1} parent=1 // pred_check
      _
    $region7: #{tpu_custom_call.1} parent=1 // pred_check_branch
      %20 = sbr.rel (0) target = $region9
    $region8: #{tpu_custom_call.1} parent=1 // pred_region
      _
    $region9: #{tpu_custom_call.1} parent=1 // pred_fallthru
      _
    // Predicated region
    $region10: #{tpu_custom_call.1} parent=1 // pred_check
      _
    $region11: #{tpu_custom_call.1} parent=1 // pred_check_branch
      %22 = sbr.rel (0) target = $region13
    $region12: #{tpu_custom_call.1} parent=1 // pred_region
      %23 = dma.done [#allocation3], 64
    $region13: #{tpu_custom_call.1} parent=1 // pred_fallthru
      _
    %v24 = vld [vmem:[#allocation2] sm:$0xf]
    %v25 = vld [vmem:[%s1] sm:$0x3]
    %27 = vset.pattern.permute.xlu0 0
    %28 = vperm.xlu0 %27, %v25
    %v29 = vpop.permute.xlu0 %28
    %v31 = vunpack.c.l.s4 269488144
    %v32 = vunpack.c.0.s8 %v31
    %v33 = vlaneseq
    %v34 = vshrl.u32 %v33, 7
    %v35 = vsub.s32 %v32, %v34
    %v36 = vrot.slane %v29, %v35
    %v38 = vmul.f32 %v24, %v36
    %39 = vst [vmem:[#allocation5] sm:$0xf] %v38
    // Predicated region
    $region14: #{tpu_custom_call.1} parent=1 // pred_check
      _
    $region15: #{tpu_custom_call.1} parent=1 // pred_check_branch
      %41 = sbr.rel (0) target = $region17
    $region16: #{tpu_custom_call.1} parent=1 // pred_region
      %s43 = ssub.s32 64, 64
      %44 = vsyncadd [#allocation4], %s43
      %s46 = sshll.u32 [#allocation5], 4
      %s47 = int_to_ptr.vmem [resolvable:$true] %s46
      %49 = dma.vmem_to_hbm [thread:$0]  %s47, 64, %s2, [#allocation4]
    $region17: #{tpu_custom_call.1} parent=1 // pred_fallthru
      _
    // Predicated region
    $region18: #{tpu_custom_call.1} parent=1 // pred_check
      _
    $region19: #{tpu_custom_call.1} parent=1 // pred_check_branch
      %51 = sbr.rel (0) target = $region21
    $region20: #{tpu_custom_call.1} parent=1 // pred_region
      %52 = dma.done [#allocation4], 64
    $region21: #{tpu_custom_call.1} parent=1 // pred_fallthru
      _
    %53 = vsyncpa [#allocation3], 1
    %54 = vsyncpa [#allocation4], 1

</llo_original>
